<compile_context>
chip_gen: v5e
topology: v5e:2x2
jax: 0.10.0
libtpu: 0.0.40
codegen_flags: <defaults>
</compile_context>

<pallas_src>
import math
import numpy as np
import jax
import jax.numpy as jnp
from jax.experimental import pallas as pl
from jax.experimental.pallas import tpu as pltpu


def _round_up(n, m):
    return ((n + m - 1) // m) * m


def _mxu_dtype():
    # bf16 matmuls only on a real TPU backend; the CPU executor cannot run
    # BF16 x BF16 = F32 dots (previous failure mode), so fall back to f32.
    return jnp.bfloat16 if jax.default_backend() == "tpu" else jnp.float32


def _vmem_limit_bytes():
    # Generation-aware limit: ~3/4 of physical VMEM (v5e/v6e: 128 MiB,
    # v7x: 64 MiB), capped at 100 MiB.  Fallback 64 MiB if query unavailable.
    try:
        cap = pltpu.get_tpu_info().vmem_capacity_bytes
        return int(min(cap * 3 // 4, 100 * 1024 * 1024))
    except Exception:
        return 64 * 1024 * 1024


def _default_batch_blocks(B_pad):
    # Only v7x has 2 TensorCores per chip; splitting the batch on a 1-TC chip
    # just doubles the number of sequential recurrence steps.
    try:
        kind = jax.devices()[0].device_kind.lower()
    except Exception:
        return 1
    two_tc = "v7" in kind
    return 2 if (two_tc and B_pad >= 16 and B_pad % 16 == 0) else 1


def _invariant_spec(shape):
    # Grid-invariant block (constant index_map): single-buffer it so the
    # pipeline does not waste VMEM on a second copy of the weights.
    index_map = lambda b, t: (0,) * len(shape)
    try:
        return pl.BlockSpec(shape, index_map, pipeline_mode=pl.Buffered(1))
    except Exception:
        return pl.BlockSpec(shape, index_map)


def make_esn_kernel(alpha: float, tb: int):
    """Kernel: tb recurrence steps + fused block readout per grid iteration.

    Refs: xp_ref (tb,BB,Rp) mxu_dtype, wh_ref (Rp,Rp) mxu_dtype,
          wo_ref (Rp,Op) f32, outs_ref (tb,BB,Op) f32 out,
          res_ref (BB,Rp) f32 scratch, st_ref (tb,BB,Rp) f32 scratch.
    """
    leaky = float(alpha) != 1.0

    def kernel(xp_ref, wh_ref, wo_ref, outs_ref, res_ref, st_ref):
        # Start of each batch block's time sweep -> reset the reservoir state.
        @pl.when(pl.program_id(1) == 0)
        def _():
            res_ref[...] = jnp.zeros_like(res_ref)

        wh = wh_ref[...]  # grid-invariant recurrent weights (single-buffered)

        def step(tt, res):
            # MXU matmul (bf16 on TPU) with f32 accumulation; state stays f32.
            xp = xp_ref[tt].astype(jnp.float32)
            pre = xp + jnp.dot(res.astype(wh.dtype), wh,
                               preferred_element_type=jnp.float32)
            cand = jnp.tanh(pre)                       # EUP, overlaps the MXU
            new = (1.0 - alpha) * res + alpha * cand if leaky else cand
            st_ref[tt] = new          # block states stay in VMEM scratch only
            return new

        res_ref[...] = jax.lax.fori_loop(0, tb, step, res_ref[...],
                                         unroll=True)

        # Fused readout: ONE (tb*BB, Rp) @ (Rp, Op) matmul for the whole
        # block, written as a lane-dense (tb, BB, Op=128) output slab.
        tbb, bb, rp = st_ref.shape
        op = outs_ref.shape[-1]
        st2 = st_ref[...].reshape(tbb * bb, rp)
        outs = jnp.dot(st2, wo_ref[...], preferred_element_type=jnp.float32)
        outs_ref[...] = outs.reshape(tbb, bb, op)

    return kernel


def esn_forward(x, i2h_w, h2h, out_w, out_b, alpha=1.0, *,
                timesteps_per_block=16, batch_blocks=None, mxu_dtype=None):
    """
    x      : (B, T, I)
    i2h_w  : (I, R)
    h2h    : (R, R)
    out_w  : (R, O)
    out_b  : (O,)
    Returns (last_out (B, O), outs (B, T, O))  [OUTPUT_TYPE.LAST_OUT].
    NOTE: alpha must be a static Python float (it specializes the kernel).
    """
    B, T, I = x.shape
    R = h2h.shape[0]
    O = out_w.shape[1]
    if mxu_dtype is None:
        mxu_dtype = _mxu_dtype()

    # Stage 1 (parallel, outside the recurrence): big input-projection matmul,
    # emitted time-major (T, B, R) and stored in the MXU dtype (bf16 on TPU).
    xproj = jnp.einsum("bti,ir->tbr",
                       x.astype(mxu_dtype), i2h_w.astype(mxu_dtype),
                       preferred_element_type=jnp.float32).astype(mxu_dtype)

    # TPU-friendly padding (exact: padded reservoir columns / batch rows stay
    # identically zero through the recurrence).
    tb = max(1, min(int(timesteps_per_block), _round_up(T, 8)))
    B_pad = _round_up(max(B, 8), 8)                       # sublane align
    R_pad = _round_up(max(R, 128), 128)                   # lane / MXU align
    O_pad = _round_up(max(O, 128), 128)                   # lane-dense readout
    T_pad = _round_up(T, tb)

    nb = _default_batch_blocks(B_pad) if batch_blocks is None else int(batch_blocks)
    if nb < 1 or B_pad % (8 * nb) != 0:
        nb = 1
    BB = B_pad // nb
    nt = T_pad // tb

    xproj_p = jnp.pad(xproj, ((0, T_pad - T), (0, B_pad - B), (0, R_pad - R)))
    wh_p = jnp.pad(h2h.astype(jnp.float32),
                   ((0, R_pad - R), (0, R_pad - R))).astype(mxu_dtype)
    wo_p = jnp.pad(out_w.astype(jnp.float32),
                   ((0, R_pad - R), (0, O_pad - O)))

    kernel = make_esn_kernel(float(alpha), tb)

    # Stage 2 (serial): recurrence + fused readout.  No (T,B,R_pad) states
    # round-trip to HBM; only the small (T,B,128) outs slab is written.
    outs_p = pl.pallas_call(
        kernel,
        out_shape=jax.ShapeDtypeStruct((T_pad, B_pad, O_pad), jnp.float32),
        grid_spec=pltpu.PrefetchScalarGridSpec(
            num_scalar_prefetch=0,
            grid=(nb, nt),
            in_specs=[
                pl.BlockSpec((tb, BB, R_pad), lambda b, t: (t, b, 0)),  # xproj
                _invariant_spec((R_pad, R_pad)),                        # W_h
                _invariant_spec((R_pad, O_pad)),                        # W_out
            ],
            out_specs=pl.BlockSpec((tb, BB, O_pad), lambda b, t: (t, b, 0)),
            scratch_shapes=[
                pltpu.VMEM((BB, R_pad), jnp.float32),      # reservoir state
                pltpu.VMEM((tb, BB, R_pad), jnp.float32),  # block states
            ],
        ),
        compiler_params=pltpu.CompilerParams(
            dimension_semantics=("parallel", "arbitrary"),  # batch ||, time seq
            vmem_limit_bytes=_vmem_limit_bytes(),
        ),
    )(xproj_p, wh_p, wo_p)

    # Un-pad, go batch-major, add bias (tiny array; transpose is negligible).
    outs = jnp.transpose(outs_p[:T, :B, :O], (1, 0, 2)) \
        + out_b.astype(jnp.float32)[None, None, :]
    last_out = outs[:, -1, :]      # t = T-1 of the *unpadded* sequence
    return last_out, outs


def esn_forward_ref(x, i2h_w, h2h, out_w, out_b, alpha=1.0, *, mxu_dtype=None):
    """Pure-JAX lax.scan reference using the same arithmetic (MXU-dtype
    matmul operands, f32 state/accumulation) for a tight numerical check."""
    if mxu_dtype is None:
        mxu_dtype = _mxu_dtype()
    B, T, I = x.shape
    R = h2h.shape[0]
    xproj = jnp.einsum("bti,ir->tbr",
                       x.astype(mxu_dtype), i2h_w.astype(mxu_dtype),
                       preferred_element_type=jnp.float32
                       ).astype(mxu_dtype).astype(jnp.float32)   # (T, B, R)
    wh = h2h.astype(mxu_dtype)
    res0 = jnp.zeros((B, R), jnp.float32)
    leaky = float(alpha) != 1.0

    def step(res, xp_t):
        pre = xp_t + jnp.dot(res.astype(mxu_dtype), wh,
                             preferred_element_type=jnp.float32)
        cand = jnp.tanh(pre)
        res = (1.0 - alpha) * res + alpha * cand if leaky else cand
        return res, res

    _, states_t = jax.lax.scan(step, res0, xproj)                 # (T, B, R)
    outs_t = jnp.einsum("tbr,ro->tbo", states_t, out_w.astype(jnp.float32),
                        preferred_element_type=jnp.float32)
    outs = jnp.transpose(outs_t, (1, 0, 2)) \
        + out_b.astype(jnp.float32)[None, None, :]
    return outs[:, -1, :], outs


def init_esn_params(key, input_size, reservoir_size, output_size,
                    alpha=1.0, spectral_radius=0.9):
    """Deterministic synthetic init mirroring the PyTorch __init__ shapes."""
    k_res, k_i2h, k_inp_b, k_ow, k_ob = jax.random.split(key, 5)

    # Reservoir matrix: dense gaussian (sparsity=0.0), scaled to spectral
    # radius, then leaky transform W = (W - (1-alpha) I) / alpha.
    W = np.asarray(jax.random.normal(k_res, (reservoir_size, reservoir_size),
                                     dtype=jnp.float32))
    rho = float(np.max(np.abs(np.linalg.eigvals(W.astype(np.float64)))))
    W = W * (spectral_radius / rho)
    W = (W - (1.0 - alpha) * np.eye(reservoir_size, dtype=np.float32)) / alpha
    h2h = jnp.asarray(W, dtype=jnp.float32)

    scale = 1.0 / math.sqrt(reservoir_size)
    i2h_w = scale * jax.random.normal(k_i2h, (input_size, reservoir_size),
                                      dtype=jnp.float32)
    # inp_b exists in the PyTorch module but is never used in forward().
    _inp_b = scale * jax.random.normal(k_inp_b, (reservoir_size,),
                                       dtype=jnp.float32)
    out_w = jax.random.normal(k_ow, (reservoir_size, output_size),
                              dtype=jnp.float32)
    out_b = jax.random.normal(k_ob, (output_size,), dtype=jnp.float32)
    return i2h_w, h2h, out_w, out_b


if __name__ == "__main__":
    # Small shapes consistent with forward(): x is (B, T, I).
    B, T, I, R, O = 4, 16, 16, 128, 8
    alpha = 0.8   # exercise the leaky blend path

    key = jax.random.PRNGKey(0)
    k_params, k_x = jax.random.split(key)
    i2h_w, h2h, out_w, out_b = init_esn_params(k_params, I, R, O, alpha=alpha)
    x = jax.random.normal(k_x, (B, T, I), dtype=jnp.float32)

    last_out, outs = esn_forward(x, i2h_w, h2h, out_w, out_b, alpha=alpha,
                                 timesteps_per_block=16)
    last_out = jax.block_until_ready(last_out)
    outs = jax.block_until_ready(outs)

    ref_last, ref_outs = esn_forward_ref(x, i2h_w, h2h, out_w, out_b,
                                         alpha=alpha)
    ref_last = jax.block_until_ready(ref_last)
    ref_outs = jax.block_until_ready(ref_outs)

    assert last_out.shape == (B, O)
    assert outs.shape == (B, T, O)
    np.testing.assert_allclose(np.asarray(outs), np.asarray(ref_outs),
                               rtol=5e-3, atol=5e-3)
    np.testing.assert_allclose(np.asarray(last_out), np.asarray(ref_last),
                               rtol=5e-3, atol=5e-3)

    print("KERNEL_OK")
</pallas_src>

<mosaic_0001>
module attributes {stable_mosaic.version = 11 : i64} {
  func.func @kernel(%arg0: i32, %arg1: i32, %arg2: memref<16x8x128xf32, #tpu.memory_space<vmem>>, %arg3: memref<128x128xf32, #tpu.memory_space<vmem>>, %arg4: memref<128x128xf32, #tpu.memory_space<vmem>>, %arg5: memref<16x8x128xf32, #tpu.memory_space<vmem>>, %arg6: memref<8x128xf32, #tpu.memory_space<vmem>>, %arg7: memref<16x8x128xf32, #tpu.memory_space<vmem>>) attributes {dimension_semantics = [#tpu.dimension_semantics<parallel>, #tpu.dimension_semantics<arbitrary>], iteration_bounds = array<i64: 1, 1>, scalar_prefetch = 0 : i64, scratch_operands = 2 : i64, tpu.core_type = #tpu.core_type<tc>, window_params = [{transform_indices = @transform_0, window_bounds = array<i64: 16, 8, 128>}, {pipeline_mode = #tpu.pipeline_mode<synchronous>, transform_indices = @transform_1, window_bounds = array<i64: 128, 128>}, {pipeline_mode = #tpu.pipeline_mode<synchronous>, transform_indices = @transform_2, window_bounds = array<i64: 128, 128>}, {transform_indices = @transform_3, window_bounds = array<i64: 16, 8, 128>}]} {
    %c0_i32 = arith.constant 0 : i32
    %0 = arith.cmpi eq, %arg1, %c0_i32 : i32
    %1 = arith.extui %0 : i1 to i32
    %c0_i32_0 = arith.constant 0 : i32
    %2 = arith.cmpi ne, %1, %c0_i32_0 : i32
    scf.if %2 {
      %cst_127 = arith.constant 0.000000e+00 : f32
      %252 = vector.broadcast %cst_127 : f32 to vector<8x128xf32>
      %c0_128 = arith.constant 0 : index
      %c0_129 = arith.constant 0 : index
      %253 = vector.load %arg6[%c0_128, %c0_129] : memref<8x128xf32, #tpu.memory_space<vmem>>, vector<8x128xf32>
      tpu.vector_store %arg6[%c0_128, %c0_129], %252 {strides = array<i32>} : memref<8x128xf32, #tpu.memory_space<vmem>>, vector<8x128xf32>,
    } else {
    }
    %c0 = arith.constant 0 : index
    %c0_1 = arith.constant 0 : index
    %3 = vector.load %arg3[%c0, %c0_1] : memref<128x128xf32, #tpu.memory_space<vmem>>, vector<128x128xf32>
    %c0_2 = arith.constant 0 : index
    %c0_3 = arith.constant 0 : index
    %4 = vector.load %arg6[%c0_2, %c0_3] : memref<8x128xf32, #tpu.memory_space<vmem>>, vector<8x128xf32>
    %c0_i32_4 = arith.constant 0 : i32
    %5 = arith.index_cast %c0_i32_4 : i32 to index
    %c0_5 = arith.constant 0 : index
    %c0_6 = arith.constant 0 : index
    %6 = vector.load %arg2[%5, %c0_5, %c0_6] : memref<16x8x128xf32, #tpu.memory_space<vmem>>, vector<1x8x128xf32>
    %7 = vector.shape_cast %6 : vector<1x8x128xf32> to vector<8x128xf32>
    %cst = arith.constant dense<0.000000e+00> : vector<8x128xf32>
    %8 = tpu.matmul %4, %3, %cst {dimension_numbers = #tpu.dot_dimension_numbers<[1], [0], [0], [1], [0, 0, 1, 1], [], []>} : vector<8x128xf32>, vector<128x128xf32>, vector<8x128xf32> -> vector<8x128xf32>
    %9 = arith.addf %7, %8 : vector<8x128xf32>
    %10 = math.tanh %9 : vector<8x128xf32>
    %cst_7 = arith.constant 2.000000e-01 : f32
    %11 = vector.broadcast %cst_7 : f32 to vector<8x128xf32>
    %12 = arith.mulf %11, %4 : vector<8x128xf32>
    %cst_8 = arith.constant 8.000000e-01 : f32
    %13 = vector.broadcast %cst_8 : f32 to vector<8x128xf32>
    %14 = arith.mulf %13, %10 : vector<8x128xf32>
    %15 = arith.addf %12, %14 : vector<8x128xf32>
    %16 = arith.index_cast %c0_i32_4 : i32 to index
    %c0_9 = arith.constant 0 : index
    %c0_10 = arith.constant 0 : index
    %17 = vector.load %arg7[%16, %c0_9, %c0_10] : memref<16x8x128xf32, #tpu.memory_space<vmem>>, vector<1x8x128xf32>
    %18 = vector.shape_cast %17 : vector<1x8x128xf32> to vector<8x128xf32>
    %19 = vector.shape_cast %15 : vector<8x128xf32> to vector<1x8x128xf32>
    tpu.vector_store %arg7[%16, %c0_9, %c0_10], %19 {strides = array<i32>} : memref<16x8x128xf32, #tpu.memory_space<vmem>>, vector<1x8x128xf32>,
    %c1_i32 = arith.constant 1 : i32
    %20 = arith.index_cast %c1_i32 : i32 to index
    %c0_11 = arith.constant 0 : index
    %c0_12 = arith.constant 0 : index
    %21 = vector.load %arg2[%20, %c0_11, %c0_12] : memref<16x8x128xf32, #tpu.memory_space<vmem>>, vector<1x8x128xf32>
    %22 = vector.shape_cast %21 : vector<1x8x128xf32> to vector<8x128xf32>
    %cst_13 = arith.constant dense<0.000000e+00> : vector<8x128xf32>
    %23 = tpu.matmul %15, %3, %cst_13 {dimension_numbers = #tpu.dot_dimension_numbers<[1], [0], [0], [1], [0, 0, 1, 1], [], []>} : vector<8x128xf32>, vector<128x128xf32>, vector<8x128xf32> -> vector<8x128xf32>
    %24 = arith.addf %22, %23 : vector<8x128xf32>
    %25 = math.tanh %24 : vector<8x128xf32>
    %cst_14 = arith.constant 2.000000e-01 : f32
    %26 = vector.broadcast %cst_14 : f32 to vector<8x128xf32>
    %27 = arith.mulf %26, %15 : vector<8x128xf32>
    %cst_15 = arith.constant 8.000000e-01 : f32
    %28 = vector.broadcast %cst_15 : f32 to vector<8x128xf32>
    %29 = arith.mulf %28, %25 : vector<8x128xf32>
    %30 = arith.addf %27, %29 : vector<8x128xf32>
    %31 = arith.index_cast %c1_i32 : i32 to index
    %c0_16 = arith.constant 0 : index
    %c0_17 = arith.constant 0 : index
    %32 = vector.load %arg7[%31, %c0_16, %c0_17] : memref<16x8x128xf32, #tpu.memory_space<vmem>>, vector<1x8x128xf32>
    %33 = vector.shape_cast %32 : vector<1x8x128xf32> to vector<8x128xf32>
    %34 = vector.shape_cast %30 : vector<8x128xf32> to vector<1x8x128xf32>
    tpu.vector_store %arg7[%31, %c0_16, %c0_17], %34 {strides = array<i32>} : memref<16x8x128xf32, #tpu.memory_space<vmem>>, vector<1x8x128xf32>,
    %c2_i32 = arith.constant 2 : i32
    %35 = arith.index_cast %c2_i32 : i32 to index
    %c0_18 = arith.constant 0 : index
    %c0_19 = arith.constant 0 : index
    %36 = vector.load %arg2[%35, %c0_18, %c0_19] : memref<16x8x128xf32, #tpu.memory_space<vmem>>, vector<1x8x128xf32>
    %37 = vector.shape_cast %36 : vector<1x8x128xf32> to vector<8x128xf32>
    %cst_20 = arith.constant dense<0.000000e+00> : vector<8x128xf32>
    %38 = tpu.matmul %30, %3, %cst_20 {dimension_numbers = #tpu.dot_dimension_numbers<[1], [0], [0], [1], [0, 0, 1, 1], [], []>} : vector<8x128xf32>, vector<128x128xf32>, vector<8x128xf32> -> vector<8x128xf32>
    %39 = arith.addf %37, %38 : vector<8x128xf32>
    %40 = math.tanh %39 : vector<8x128xf32>
    %cst_21 = arith.constant 2.000000e-01 : f32
    %41 = vector.broadcast %cst_21 : f32 to vector<8x128xf32>
    %42 = arith.mulf %41, %30 : vector<8x128xf32>
    %cst_22 = arith.constant 8.000000e-01 : f32
    %43 = vector.broadcast %cst_22 : f32 to vector<8x128xf32>
    %44 = arith.mulf %43, %40 : vector<8x128xf32>
    %45 = arith.addf %42, %44 : vector<8x128xf32>
    %46 = arith.index_cast %c2_i32 : i32 to index
    %c0_23 = arith.constant 0 : index
    %c0_24 = arith.constant 0 : index
    %47 = vector.load %arg7[%46, %c0_23, %c0_24] : memref<16x8x128xf32, #tpu.memory_space<vmem>>, vector<1x8x128xf32>
    %48 = vector.shape_cast %47 : vector<1x8x128xf32> to vector<8x128xf32>
    %49 = vector.shape_cast %45 : vector<8x128xf32> to vector<1x8x128xf32>
    tpu.vector_store %arg7[%46, %c0_23, %c0_24], %49 {strides = array<i32>} : memref<16x8x128xf32, #tpu.memory_space<vmem>>, vector<1x8x128xf32>,
    %c3_i32 = arith.constant 3 : i32
    %50 = arith.index_cast %c3_i32 : i32 to index
    %c0_25 = arith.constant 0 : index
    %c0_26 = arith.constant 0 : index
    %51 = vector.load %arg2[%50, %c0_25, %c0_26] : memref<16x8x128xf32, #tpu.memory_space<vmem>>, vector<1x8x128xf32>
    %52 = vector.shape_cast %51 : vector<1x8x128xf32> to vector<8x128xf32>
    %cst_27 = arith.constant dense<0.000000e+00> : vector<8x128xf32>
    %53 = tpu.matmul %45, %3, %cst_27 {dimension_numbers = #tpu.dot_dimension_numbers<[1], [0], [0], [1], [0, 0, 1, 1], [], []>} : vector<8x128xf32>, vector<128x128xf32>, vector<8x128xf32> -> vector<8x128xf32>
    %54 = arith.addf %52, %53 : vector<8x128xf32>
    %55 = math.tanh %54 : vector<8x128xf32>
    %cst_28 = arith.constant 2.000000e-01 : f32
    %56 = vector.broadcast %cst_28 : f32 to vector<8x128xf32>
    %57 = arith.mulf %56, %45 : vector<8x128xf32>
    %cst_29 = arith.constant 8.000000e-01 : f32
    %58 = vector.broadcast %cst_29 : f32 to vector<8x128xf32>
    %59 = arith.mulf %58, %55 : vector<8x128xf32>
    %60 = arith.addf %57, %59 : vector<8x128xf32>
    %61 = arith.index_cast %c3_i32 : i32 to index
    %c0_30 = arith.constant 0 : index
    %c0_31 = arith.constant 0 : index
    %62 = vector.load %arg7[%61, %c0_30, %c0_31] : memref<16x8x128xf32, #tpu.memory_space<vmem>>, vector<1x8x128xf32>
    %63 = vector.shape_cast %62 : vector<1x8x128xf32> to vector<8x128xf32>
    %64 = vector.shape_cast %60 : vector<8x128xf32> to vector<1x8x128xf32>
    tpu.vector_store %arg7[%61, %c0_30, %c0_31], %64 {strides = array<i32>} : memref<16x8x128xf32, #tpu.memory_space<vmem>>, vector<1x8x128xf32>,
    %c4_i32 = arith.constant 4 : i32
    %65 = arith.index_cast %c4_i32 : i32 to index
    %c0_32 = arith.constant 0 : index
    %c0_33 = arith.constant 0 : index
    %66 = vector.load %arg2[%65, %c0_32, %c0_33] : memref<16x8x128xf32, #tpu.memory_space<vmem>>, vector<1x8x128xf32>
    %67 = vector.shape_cast %66 : vector<1x8x128xf32> to vector<8x128xf32>
    %cst_34 = arith.constant dense<0.000000e+00> : vector<8x128xf32>
    %68 = tpu.matmul %60, %3, %cst_34 {dimension_numbers = #tpu.dot_dimension_numbers<[1], [0], [0], [1], [0, 0, 1, 1], [], []>} : vector<8x128xf32>, vector<128x128xf32>, vector<8x128xf32> -> vector<8x128xf32>
    %69 = arith.addf %67, %68 : vector<8x128xf32>
    %70 = math.tanh %69 : vector<8x128xf32>
    %cst_35 = arith.constant 2.000000e-01 : f32
    %71 = vector.broadcast %cst_35 : f32 to vector<8x128xf32>
    %72 = arith.mulf %71, %60 : vector<8x128xf32>
    %cst_36 = arith.constant 8.000000e-01 : f32
    %73 = vector.broadcast %cst_36 : f32 to vector<8x128xf32>
    %74 = arith.mulf %73, %70 : vector<8x128xf32>
    %75 = arith.addf %72, %74 : vector<8x128xf32>
    %76 = arith.index_cast %c4_i32 : i32 to index
    %c0_37 = arith.constant 0 : index
    %c0_38 = arith.constant 0 : index
    %77 = vector.load %arg7[%76, %c0_37, %c0_38] : memref<16x8x128xf32, #tpu.memory_space<vmem>>, vector<1x8x128xf32>
    %78 = vector.shape_cast %77 : vector<1x8x128xf32> to vector<8x128xf32>
    %79 = vector.shape_cast %75 : vector<8x128xf32> to vector<1x8x128xf32>
    tpu.vector_store %arg7[%76, %c0_37, %c0_38], %79 {strides = array<i32>} : memref<16x8x128xf32, #tpu.memory_space<vmem>>, vector<1x8x128xf32>,
    %c5_i32 = arith.constant 5 : i32
    %80 = arith.index_cast %c5_i32 : i32 to index
    %c0_39 = arith.constant 0 : index
    %c0_40 = arith.constant 0 : index
    %81 = vector.load %arg2[%80, %c0_39, %c0_40] : memref<16x8x128xf32, #tpu.memory_space<vmem>>, vector<1x8x128xf32>
    %82 = vector.shape_cast %81 : vector<1x8x128xf32> to vector<8x128xf32>
    %cst_41 = arith.constant dense<0.000000e+00> : vector<8x128xf32>
    %83 = tpu.matmul %75, %3, %cst_41 {dimension_numbers = #tpu.dot_dimension_numbers<[1], [0], [0], [1], [0, 0, 1, 1], [], []>} : vector<8x128xf32>, vector<128x128xf32>, vector<8x128xf32> -> vector<8x128xf32>
    %84 = arith.addf %82, %83 : vector<8x128xf32>
    %85 = math.tanh %84 : vector<8x128xf32>
    %cst_42 = arith.constant 2.000000e-01 : f32
    %86 = vector.broadcast %cst_42 : f32 to vector<8x128xf32>
    %87 = arith.mulf %86, %75 : vector<8x128xf32>
    %cst_43 = arith.constant 8.000000e-01 : f32
    %88 = vector.broadcast %cst_43 : f32 to vector<8x128xf32>
    %89 = arith.mulf %88, %85 : vector<8x128xf32>
    %90 = arith.addf %87, %89 : vector<8x128xf32>
    %91 = arith.index_cast %c5_i32 : i32 to index
    %c0_44 = arith.constant 0 : index
    %c0_45 = arith.constant 0 : index
    %92 = vector.load %arg7[%91, %c0_44, %c0_45] : memref<16x8x128xf32, #tpu.memory_space<vmem>>, vector<1x8x128xf32>
    %93 = vector.shape_cast %92 : vector<1x8x128xf32> to vector<8x128xf32>
    %94 = vector.shape_cast %90 : vector<8x128xf32> to vector<1x8x128xf32>
    tpu.vector_store %arg7[%91, %c0_44, %c0_45], %94 {strides = array<i32>} : memref<16x8x128xf32, #tpu.memory_space<vmem>>, vector<1x8x128xf32>,
    %c6_i32 = arith.constant 6 : i32
    %95 = arith.index_cast %c6_i32 : i32 to index
    %c0_46 = arith.constant 0 : index
    %c0_47 = arith.constant 0 : index
    %96 = vector.load %arg2[%95, %c0_46, %c0_47] : memref<16x8x128xf32, #tpu.memory_space<vmem>>, vector<1x8x128xf32>
    %97 = vector.shape_cast %96 : vector<1x8x128xf32> to vector<8x128xf32>
    %cst_48 = arith.constant dense<0.000000e+00> : vector<8x128xf32>
    %98 = tpu.matmul %90, %3, %cst_48 {dimension_numbers = #tpu.dot_dimension_numbers<[1], [0], [0], [1], [0, 0, 1, 1], [], []>} : vector<8x128xf32>, vector<128x128xf32>, vector<8x128xf32> -> vector<8x128xf32>
    %99 = arith.addf %97, %98 : vector<8x128xf32>
    %100 = math.tanh %99 : vector<8x128xf32>
    %cst_49 = arith.constant 2.000000e-01 : f32
    %101 = vector.broadcast %cst_49 : f32 to vector<8x128xf32>
    %102 = arith.mulf %101, %90 : vector<8x128xf32>
    %cst_50 = arith.constant 8.000000e-01 : f32
    %103 = vector.broadcast %cst_50 : f32 to vector<8x128xf32>
    %104 = arith.mulf %103, %100 : vector<8x128xf32>
    %105 = arith.addf %102, %104 : vector<8x128xf32>
    %106 = arith.index_cast %c6_i32 : i32 to index
    %c0_51 = arith.constant 0 : index
    %c0_52 = arith.constant 0 : index
    %107 = vector.load %arg7[%106, %c0_51, %c0_52] : memref<16x8x128xf32, #tpu.memory_space<vmem>>, vector<1x8x128xf32>
    %108 = vector.shape_cast %107 : vector<1x8x128xf32> to vector<8x128xf32>
    %109 = vector.shape_cast %105 : vector<8x128xf32> to vector<1x8x128xf32>
    tpu.vector_store %arg7[%106, %c0_51, %c0_52], %109 {strides = array<i32>} : memref<16x8x128xf32, #tpu.memory_space<vmem>>, vector<1x8x128xf32>,
    %c7_i32 = arith.constant 7 : i32
    %110 = arith.index_cast %c7_i32 : i32 to index
    %c0_53 = arith.constant 0 : index
    %c0_54 = arith.constant 0 : index
    %111 = vector.load %arg2[%110, %c0_53, %c0_54] : memref<16x8x128xf32, #tpu.memory_space<vmem>>, vector<1x8x128xf32>
    %112 = vector.shape_cast %111 : vector<1x8x128xf32> to vector<8x128xf32>
    %cst_55 = arith.constant dense<0.000000e+00> : vector<8x128xf32>
    %113 = tpu.matmul %105, %3, %cst_55 {dimension_numbers = #tpu.dot_dimension_numbers<[1], [0], [0], [1], [0, 0, 1, 1], [], []>} : vector<8x128xf32>, vector<128x128xf32>, vector<8x128xf32> -> vector<8x128xf32>
    %114 = arith.addf %112, %113 : vector<8x128xf32>
    %115 = math.tanh %114 : vector<8x128xf32>
    %cst_56 = arith.constant 2.000000e-01 : f32
    %116 = vector.broadcast %cst_56 : f32 to vector<8x128xf32>
    %117 = arith.mulf %116, %105 : vector<8x128xf32>
    %cst_57 = arith.constant 8.000000e-01 : f32
    %118 = vector.broadcast %cst_57 : f32 to vector<8x128xf32>
    %119 = arith.mulf %118, %115 : vector<8x128xf32>
    %120 = arith.addf %117, %119 : vector<8x128xf32>
    %121 = arith.index_cast %c7_i32 : i32 to index
    %c0_58 = arith.constant 0 : index
    %c0_59 = arith.constant 0 : index
    %122 = vector.load %arg7[%121, %c0_58, %c0_59] : memref<16x8x128xf32, #tpu.memory_space<vmem>>, vector<1x8x128xf32>
    %123 = vector.shape_cast %122 : vector<1x8x128xf32> to vector<8x128xf32>
    %124 = vector.shape_cast %120 : vector<8x128xf32> to vector<1x8x128xf32>
    tpu.vector_store %arg7[%121, %c0_58, %c0_59], %124 {strides = array<i32>} : memref<16x8x128xf32, #tpu.memory_space<vmem>>, vector<1x8x128xf32>,
    %c8_i32 = arith.constant 8 : i32
    %125 = arith.index_cast %c8_i32 : i32 to index
    %c0_60 = arith.constant 0 : index
    %c0_61 = arith.constant 0 : index
    %126 = vector.load %arg2[%125, %c0_60, %c0_61] : memref<16x8x128xf32, #tpu.memory_space<vmem>>, vector<1x8x128xf32>
    %127 = vector.shape_cast %126 : vector<1x8x128xf32> to vector<8x128xf32>
    %cst_62 = arith.constant dense<0.000000e+00> : vector<8x128xf32>
    %128 = tpu.matmul %120, %3, %cst_62 {dimension_numbers = #tpu.dot_dimension_numbers<[1], [0], [0], [1], [0, 0, 1, 1], [], []>} : vector<8x128xf32>, vector<128x128xf32>, vector<8x128xf32> -> vector<8x128xf32>
    %129 = arith.addf %127, %128 : vector<8x128xf32>
    %130 = math.tanh %129 : vector<8x128xf32>
    %cst_63 = arith.constant 2.000000e-01 : f32
    %131 = vector.broadcast %cst_63 : f32 to vector<8x128xf32>
    %132 = arith.mulf %131, %120 : vector<8x128xf32>
    %cst_64 = arith.constant 8.000000e-01 : f32
    %133 = vector.broadcast %cst_64 : f32 to vector<8x128xf32>
    %134 = arith.mulf %133, %130 : vector<8x128xf32>
    %135 = arith.addf %132, %134 : vector<8x128xf32>
    %136 = arith.index_cast %c8_i32 : i32 to index
    %c0_65 = arith.constant 0 : index
    %c0_66 = arith.constant 0 : index
    %137 = vector.load %arg7[%136, %c0_65, %c0_66] : memref<16x8x128xf32, #tpu.memory_space<vmem>>, vector<1x8x128xf32>
    %138 = vector.shape_cast %137 : vector<1x8x128xf32> to vector<8x128xf32>
    %139 = vector.shape_cast %135 : vector<8x128xf32> to vector<1x8x128xf32>
    tpu.vector_store %arg7[%136, %c0_65, %c0_66], %139 {strides = array<i32>} : memref<16x8x128xf32, #tpu.memory_space<vmem>>, vector<1x8x128xf32>,
    %c9_i32 = arith.constant 9 : i32
    %140 = arith.index_cast %c9_i32 : i32 to index
    %c0_67 = arith.constant 0 : index
    %c0_68 = arith.constant 0 : index
    %141 = vector.load %arg2[%140, %c0_67, %c0_68] : memref<16x8x128xf32, #tpu.memory_space<vmem>>, vector<1x8x128xf32>
    %142 = vector.shape_cast %141 : vector<1x8x128xf32> to vector<8x128xf32>
    %cst_69 = arith.constant dense<0.000000e+00> : vector<8x128xf32>
    %143 = tpu.matmul %135, %3, %cst_69 {dimension_numbers = #tpu.dot_dimension_numbers<[1], [0], [0], [1], [0, 0, 1, 1], [], []>} : vector<8x128xf32>, vector<128x128xf32>, vector<8x128xf32> -> vector<8x128xf32>
    %144 = arith.addf %142, %143 : vector<8x128xf32>
    %145 = math.tanh %144 : vector<8x128xf32>
    %cst_70 = arith.constant 2.000000e-01 : f32
    %146 = vector.broadcast %cst_70 : f32 to vector<8x128xf32>
    %147 = arith.mulf %146, %135 : vector<8x128xf32>
    %cst_71 = arith.constant 8.000000e-01 : f32
    %148 = vector.broadcast %cst_71 : f32 to vector<8x128xf32>
    %149 = arith.mulf %148, %145 : vector<8x128xf32>
    %150 = arith.addf %147, %149 : vector<8x128xf32>
    %151 = arith.index_cast %c9_i32 : i32 to index
    %c0_72 = arith.constant 0 : index
    %c0_73 = arith.constant 0 : index
    %152 = vector.load %arg7[%151, %c0_72, %c0_73] : memref<16x8x128xf32, #tpu.memory_space<vmem>>, vector<1x8x128xf32>
    %153 = vector.shape_cast %152 : vector<1x8x128xf32> to vector<8x128xf32>
    %154 = vector.shape_cast %150 : vector<8x128xf32> to vector<1x8x128xf32>
    tpu.vector_store %arg7[%151, %c0_72, %c0_73], %154 {strides = array<i32>} : memref<16x8x128xf32, #tpu.memory_space<vmem>>, vector<1x8x128xf32>,
    %c10_i32 = arith.constant 10 : i32
    %155 = arith.index_cast %c10_i32 : i32 to index
    %c0_74 = arith.constant 0 : index
    %c0_75 = arith.constant 0 : index
    %156 = vector.load %arg2[%155, %c0_74, %c0_75] : memref<16x8x128xf32, #tpu.memory_space<vmem>>, vector<1x8x128xf32>
    %157 = vector.shape_cast %156 : vector<1x8x128xf32> to vector<8x128xf32>
    %cst_76 = arith.constant dense<0.000000e+00> : vector<8x128xf32>
    %158 = tpu.matmul %150, %3, %cst_76 {dimension_numbers = #tpu.dot_dimension_numbers<[1], [0], [0], [1], [0, 0, 1, 1], [], []>} : vector<8x128xf32>, vector<128x128xf32>, vector<8x128xf32> -> vector<8x128xf32>
    %159 = arith.addf %157, %158 : vector<8x128xf32>
    %160 = math.tanh %159 : vector<8x128xf32>
    %cst_77 = arith.constant 2.000000e-01 : f32
    %161 = vector.broadcast %cst_77 : f32 to vector<8x128xf32>
    %162 = arith.mulf %161, %150 : vector<8x128xf32>
    %cst_78 = arith.constant 8.000000e-01 : f32
    %163 = vector.broadcast %cst_78 : f32 to vector<8x128xf32>
    %164 = arith.mulf %163, %160 : vector<8x128xf32>
    %165 = arith.addf %162, %164 : vector<8x128xf32>
    %166 = arith.index_cast %c10_i32 : i32 to index
    %c0_79 = arith.constant 0 : index
    %c0_80 = arith.constant 0 : index
    %167 = vector.load %arg7[%166, %c0_79, %c0_80] : memref<16x8x128xf32, #tpu.memory_space<vmem>>, vector<1x8x128xf32>
    %168 = vector.shape_cast %167 : vector<1x8x128xf32> to vector<8x128xf32>
    %169 = vector.shape_cast %165 : vector<8x128xf32> to vector<1x8x128xf32>
    tpu.vector_store %arg7[%166, %c0_79, %c0_80], %169 {strides = array<i32>} : memref<16x8x128xf32, #tpu.memory_space<vmem>>, vector<1x8x128xf32>,
    %c11_i32 = arith.constant 11 : i32
    %170 = arith.index_cast %c11_i32 : i32 to index
    %c0_81 = arith.constant 0 : index
    %c0_82 = arith.constant 0 : index
    %171 = vector.load %arg2[%170, %c0_81, %c0_82] : memref<16x8x128xf32, #tpu.memory_space<vmem>>, vector<1x8x128xf32>
    %172 = vector.shape_cast %171 : vector<1x8x128xf32> to vector<8x128xf32>
    %cst_83 = arith.constant dense<0.000000e+00> : vector<8x128xf32>
    %173 = tpu.matmul %165, %3, %cst_83 {dimension_numbers = #tpu.dot_dimension_numbers<[1], [0], [0], [1], [0, 0, 1, 1], [], []>} : vector<8x128xf32>, vector<128x128xf32>, vector<8x128xf32> -> vector<8x128xf32>
    %174 = arith.addf %172, %173 : vector<8x128xf32>
    %175 = math.tanh %174 : vector<8x128xf32>
    %cst_84 = arith.constant 2.000000e-01 : f32
    %176 = vector.broadcast %cst_84 : f32 to vector<8x128xf32>
    %177 = arith.mulf %176, %165 : vector<8x128xf32>
    %cst_85 = arith.constant 8.000000e-01 : f32
    %178 = vector.broadcast %cst_85 : f32 to vector<8x128xf32>
    %179 = arith.mulf %178, %175 : vector<8x128xf32>
    %180 = arith.addf %177, %179 : vector<8x128xf32>
    %181 = arith.index_cast %c11_i32 : i32 to index
    %c0_86 = arith.constant 0 : index
    %c0_87 = arith.constant 0 : index
    %182 = vector.load %arg7[%181, %c0_86, %c0_87] : memref<16x8x128xf32, #tpu.memory_space<vmem>>, vector<1x8x128xf32>
    %183 = vector.shape_cast %182 : vector<1x8x128xf32> to vector<8x128xf32>
    %184 = vector.shape_cast %180 : vector<8x128xf32> to vector<1x8x128xf32>
    tpu.vector_store %arg7[%181, %c0_86, %c0_87], %184 {strides = array<i32>} : memref<16x8x128xf32, #tpu.memory_space<vmem>>, vector<1x8x128xf32>,
    %c12_i32 = arith.constant 12 : i32
    %185 = arith.index_cast %c12_i32 : i32 to index
    %c0_88 = arith.constant 0 : index
    %c0_89 = arith.constant 0 : index
    %186 = vector.load %arg2[%185, %c0_88, %c0_89] : memref<16x8x128xf32, #tpu.memory_space<vmem>>, vector<1x8x128xf32>
    %187 = vector.shape_cast %186 : vector<1x8x128xf32> to vector<8x128xf32>
    %cst_90 = arith.constant dense<0.000000e+00> : vector<8x128xf32>
    %188 = tpu.matmul %180, %3, %cst_90 {dimension_numbers = #tpu.dot_dimension_numbers<[1], [0], [0], [1], [0, 0, 1, 1], [], []>} : vector<8x128xf32>, vector<128x128xf32>, vector<8x128xf32> -> vector<8x128xf32>
    %189 = arith.addf %187, %188 : vector<8x128xf32>
    %190 = math.tanh %189 : vector<8x128xf32>
    %cst_91 = arith.constant 2.000000e-01 : f32
    %191 = vector.broadcast %cst_91 : f32 to vector<8x128xf32>
    %192 = arith.mulf %191, %180 : vector<8x128xf32>
    %cst_92 = arith.constant 8.000000e-01 : f32
    %193 = vector.broadcast %cst_92 : f32 to vector<8x128xf32>
    %194 = arith.mulf %193, %190 : vector<8x128xf32>
    %195 = arith.addf %192, %194 : vector<8x128xf32>
    %196 = arith.index_cast %c12_i32 : i32 to index
    %c0_93 = arith.constant 0 : index
    %c0_94 = arith.constant 0 : index
    %197 = vector.load %arg7[%196, %c0_93, %c0_94] : memref<16x8x128xf32, #tpu.memory_space<vmem>>, vector<1x8x128xf32>
    %198 = vector.shape_cast %197 : vector<1x8x128xf32> to vector<8x128xf32>
    %199 = vector.shape_cast %195 : vector<8x128xf32> to vector<1x8x128xf32>
    tpu.vector_store %arg7[%196, %c0_93, %c0_94], %199 {strides = array<i32>} : memref<16x8x128xf32, #tpu.memory_space<vmem>>, vector<1x8x128xf32>,
    %c13_i32 = arith.constant 13 : i32
    %200 = arith.index_cast %c13_i32 : i32 to index
    %c0_95 = arith.constant 0 : index
    %c0_96 = arith.constant 0 : index
    %201 = vector.load %arg2[%200, %c0_95, %c0_96] : memref<16x8x128xf32, #tpu.memory_space<vmem>>, vector<1x8x128xf32>
    %202 = vector.shape_cast %201 : vector<1x8x128xf32> to vector<8x128xf32>
    %cst_97 = arith.constant dense<0.000000e+00> : vector<8x128xf32>
    %203 = tpu.matmul %195, %3, %cst_97 {dimension_numbers = #tpu.dot_dimension_numbers<[1], [0], [0], [1], [0, 0, 1, 1], [], []>} : vector<8x128xf32>, vector<128x128xf32>, vector<8x128xf32> -> vector<8x128xf32>
    %204 = arith.addf %202, %203 : vector<8x128xf32>
    %205 = math.tanh %204 : vector<8x128xf32>
    %cst_98 = arith.constant 2.000000e-01 : f32
    %206 = vector.broadcast %cst_98 : f32 to vector<8x128xf32>
    %207 = arith.mulf %206, %195 : vector<8x128xf32>
    %cst_99 = arith.constant 8.000000e-01 : f32
    %208 = vector.broadcast %cst_99 : f32 to vector<8x128xf32>
    %209 = arith.mulf %208, %205 : vector<8x128xf32>
    %210 = arith.addf %207, %209 : vector<8x128xf32>
    %211 = arith.index_cast %c13_i32 : i32 to index
    %c0_100 = arith.constant 0 : index
    %c0_101 = arith.constant 0 : index
    %212 = vector.load %arg7[%211, %c0_100, %c0_101] : memref<16x8x128xf32, #tpu.memory_space<vmem>>, vector<1x8x128xf32>
    %213 = vector.shape_cast %212 : vector<1x8x128xf32> to vector<8x128xf32>
    %214 = vector.shape_cast %210 : vector<8x128xf32> to vector<1x8x128xf32>
    tpu.vector_store %arg7[%211, %c0_100, %c0_101], %214 {strides = array<i32>} : memref<16x8x128xf32, #tpu.memory_space<vmem>>, vector<1x8x128xf32>,
    %c14_i32 = arith.constant 14 : i32
    %215 = arith.index_cast %c14_i32 : i32 to index
    %c0_102 = arith.constant 0 : index
    %c0_103 = arith.constant 0 : index
    %216 = vector.load %arg2[%215, %c0_102, %c0_103] : memref<16x8x128xf32, #tpu.memory_space<vmem>>, vector<1x8x128xf32>
    %217 = vector.shape_cast %216 : vector<1x8x128xf32> to vector<8x128xf32>
    %cst_104 = arith.constant dense<0.000000e+00> : vector<8x128xf32>
    %218 = tpu.matmul %210, %3, %cst_104 {dimension_numbers = #tpu.dot_dimension_numbers<[1], [0], [0], [1], [0, 0, 1, 1], [], []>} : vector<8x128xf32>, vector<128x128xf32>, vector<8x128xf32> -> vector<8x128xf32>
    %219 = arith.addf %217, %218 : vector<8x128xf32>
    %220 = math.tanh %219 : vector<8x128xf32>
    %cst_105 = arith.constant 2.000000e-01 : f32
    %221 = vector.broadcast %cst_105 : f32 to vector<8x128xf32>
    %222 = arith.mulf %221, %210 : vector<8x128xf32>
    %cst_106 = arith.constant 8.000000e-01 : f32
    %223 = vector.broadcast %cst_106 : f32 to vector<8x128xf32>
    %224 = arith.mulf %223, %220 : vector<8x128xf32>
    %225 = arith.addf %222, %224 : vector<8x128xf32>
    %226 = arith.index_cast %c14_i32 : i32 to index
    %c0_107 = arith.constant 0 : index
    %c0_108 = arith.constant 0 : index
    %227 = vector.load %arg7[%226, %c0_107, %c0_108] : memref<16x8x128xf32, #tpu.memory_space<vmem>>, vector<1x8x128xf32>
    %228 = vector.shape_cast %227 : vector<1x8x128xf32> to vector<8x128xf32>
    %229 = vector.shape_cast %225 : vector<8x128xf32> to vector<1x8x128xf32>
    tpu.vector_store %arg7[%226, %c0_107, %c0_108], %229 {strides = array<i32>} : memref<16x8x128xf32, #tpu.memory_space<vmem>>, vector<1x8x128xf32>,
    %c15_i32 = arith.constant 15 : i32
    %230 = arith.index_cast %c15_i32 : i32 to index
    %c0_109 = arith.constant 0 : index
    %c0_110 = arith.constant 0 : index
    %231 = vector.load %arg2[%230, %c0_109, %c0_110] : memref<16x8x128xf32, #tpu.memory_space<vmem>>, vector<1x8x128xf32>
    %232 = vector.shape_cast %231 : vector<1x8x128xf32> to vector<8x128xf32>
    %cst_111 = arith.constant dense<0.000000e+00> : vector<8x128xf32>
    %233 = tpu.matmul %225, %3, %cst_111 {dimension_numbers = #tpu.dot_dimension_numbers<[1], [0], [0], [1], [0, 0, 1, 1], [], []>} : vector<8x128xf32>, vector<128x128xf32>, vector<8x128xf32> -> vector<8x128xf32>
    %234 = arith.addf %232, %233 : vector<8x128xf32>
    %235 = math.tanh %234 : vector<8x128xf32>
    %cst_112 = arith.constant 2.000000e-01 : f32
    %236 = vector.broadcast %cst_112 : f32 to vector<8x128xf32>
    %237 = arith.mulf %236, %225 : vector<8x128xf32>
    %cst_113 = arith.constant 8.000000e-01 : f32
    %238 = vector.broadcast %cst_113 : f32 to vector<8x128xf32>
    %239 = arith.mulf %238, %235 : vector<8x128xf32>
    %240 = arith.addf %237, %239 : vector<8x128xf32>
    %241 = arith.index_cast %c15_i32 : i32 to index
    %c0_114 = arith.constant 0 : index
    %c0_115 = arith.constant 0 : index
    %242 = vector.load %arg7[%241, %c0_114, %c0_115] : memref<16x8x128xf32, #tpu.memory_space<vmem>>, vector<1x8x128xf32>
    %243 = vector.shape_cast %242 : vector<1x8x128xf32> to vector<8x128xf32>
    %244 = vector.shape_cast %240 : vector<8x128xf32> to vector<1x8x128xf32>
    tpu.vector_store %arg7[%241, %c0_114, %c0_115], %244 {strides = array<i32>} : memref<16x8x128xf32, #tpu.memory_space<vmem>>, vector<1x8x128xf32>,
    %c16_i32 = arith.constant 16 : i32
    %c0_116 = arith.constant 0 : index
    %c0_117 = arith.constant 0 : index
    %245 = vector.load %arg6[%c0_116, %c0_117] : memref<8x128xf32, #tpu.memory_space<vmem>>, vector<8x128xf32>
    tpu.vector_store %arg6[%c0_116, %c0_117], %240 {strides = array<i32>} : memref<8x128xf32, #tpu.memory_space<vmem>>, vector<8x128xf32>,
    %c0_118 = arith.constant 0 : index
    %c0_119 = arith.constant 0 : index
    %c0_120 = arith.constant 0 : index
    %246 = vector.load %arg7[%c0_118, %c0_119, %c0_120] : memref<16x8x128xf32, #tpu.memory_space<vmem>>, vector<16x8x128xf32>
    %247 = vector.shape_cast %246 : vector<16x8x128xf32> to vector<128x128xf32>
    %c0_121 = arith.constant 0 : index
    %c0_122 = arith.constant 0 : index
    %248 = vector.load %arg4[%c0_121, %c0_122] : memref<128x128xf32, #tpu.memory_space<vmem>>, vector<128x128xf32>
    %cst_123 = arith.constant dense<0.000000e+00> : vector<128x128xf32>
    %249 = tpu.matmul %247, %248, %cst_123 {dimension_numbers = #tpu.dot_dimension_numbers<[1], [0], [0], [1], [0, 0, 1, 1], [], []>} : vector<128x128xf32>, vector<128x128xf32>, vector<128x128xf32> -> vector<128x128xf32>
    %250 = vector.shape_cast %249 : vector<128x128xf32> to vector<16x8x128xf32>
    %c0_124 = arith.constant 0 : index
    %c0_125 = arith.constant 0 : index
    %c0_126 = arith.constant 0 : index
    %251 = vector.load %arg5[%c0_124, %c0_125, %c0_126] : memref<16x8x128xf32, #tpu.memory_space<vmem>>, vector<16x8x128xf32>
    tpu.vector_store %arg5[%c0_124, %c0_125, %c0_126], %250 {strides = array<i32>} : memref<16x8x128xf32, #tpu.memory_space<vmem>>, vector<16x8x128xf32>,
    return
  }
  func.func @transform_0(%arg0: i32, %arg1: i32) -> (i32, i32, i32) {
    %c0_i32 = arith.constant 0 : i32
    %c0_i32_0 = arith.constant 0 : i32
    return %arg1, %arg0, %c0_i32 : i32, i32, i32
  }
  func.func @transform_1(%arg0: i32, %arg1: i32) -> (i32, i32) {
    %c0_i32 = arith.constant 0 : i32
    %c0_i32_0 = arith.constant 0 : i32
    %c0_i32_1 = arith.constant 0 : i32
    return %c0_i32, %c0_i32_0 : i32, i32
  }
  func.func @transform_2(%arg0: i32, %arg1: i32) -> (i32, i32) {
    %c0_i32 = arith.constant 0 : i32
    %c0_i32_0 = arith.constant 0 : i32
    %c0_i32_1 = arith.constant 0 : i32
    return %c0_i32, %c0_i32_0 : i32, i32
  }
  func.func @transform_3(%arg0: i32, %arg1: i32) -> (i32, i32, i32) {
    %c0_i32 = arith.constant 0 : i32
    %c0_i32_0 = arith.constant 0 : i32
    return %arg1, %arg0, %c0_i32 : i32, i32, i32
  }
}

</mosaic_0001>

<llo_original>
// kernel: tpu_custom_call.1
$region0: #{tpu_custom_call.1}
  #allocation0 [shape = 'u32[]', space=smem, size = 0x4, offset = 0x4, fixed_abs, tag = 'smem constant byte address 0x4 - core index']
  #allocation1 [shape = 'u32[72,128]{1,0:T(1,128)}', space=vmem, size = 0x9000, scoped, tag = 'internal scratch']
  #allocation2 [shape = 'f32[8,128]{1,0:T(8,128)}', space=vmem, size = 0x1000, scoped, tag = 'scratch operand']
  #allocation3 [shape = 'f32[16,8,128]{2,1,0:T(8,128)}', space=vmem, size = 0x10000, scoped, tag = 'scratch operand']
  %s0 = inlined_call_operand.hbm [shape: f32[16,8,128], index: 0, kind: input, shape index: {}]
  %s1 = inlined_call_operand.hbm [shape: f32[128,128], index: 1, kind: input, shape index: {}]
  %s2 = inlined_call_operand.hbm [shape: f32[128,128], index: 2, kind: input, shape index: {}]
  %s3 = inlined_call_operand.hbm [shape: f32[16,8,128], index: 3, kind: output, shape index: {}]
  %s4 = sld [smem:[#allocation0]]
  $region38: #{tpu_custom_call.1} parent=0
    _
  %s6 = ssub.s32 1, %s4
  %s7 = scalar_select 0, %s6, %s4
  $region1: #{tpu_custom_call.1} parent=0
    #allocation4 [shape = 'u8[65536]{0}', space=vmem, size = 0x10000, scoped, tag = 'input window, operand 0, single buffered']
    #allocation5 [shape = 's32[1]{0}', space=sflag, size = 0x4, scoped, tag = 'scoped memory for tpu_custom_call.1']
    #allocation6 [shape = 's32[1]{0}', space=sflag, size = 0x4, scoped, tag = 'scoped memory for tpu_custom_call.1']
    #allocation7 [shape = 'u8[65536]{0}', space=vmem, size = 0x10000, scoped, tag = 'input window, operand 1, single buffered']
    #allocation8 [shape = 's32[1]{0}', space=sflag, size = 0x4, scoped, tag = 'scoped memory for tpu_custom_call.1']
    #allocation9 [shape = 'u8[65536]{0}', space=vmem, size = 0x10000, scoped, tag = 'input window, operand 2, single buffered']
    #allocation10 [shape = 'u8[65536]{0}', space=vmem, size = 0x10000, scoped, tag = 'output window, operand 0, single buffered']
    %8 = vsyncpa [#allocation5], 0
    %9 = vsyncpa [#allocation8], 0
    %10 = vsyncpa [#allocation6], 0
    // Predicated region
    $region2: #{tpu_custom_call.1} parent=1 // pred_check
      _
    $region3: #{tpu_custom_call.1} parent=1 // pred_check_branch
      %12 = sbr.rel (0) target = $region5
    $region4: #{tpu_custom_call.1} parent=1 // pred_region
      %14 = vsyncadd [#allocation5], 0
      %s15 = sshll.u32 %s0, 4
      %s16 = int_to_ptr.hbm [resolvable:$true] %s15
      %s17 = sshll.u32 [#allocation4], 4
      %s18 = int_to_ptr.vmem [resolvable:$true] %s17
      %23 = dma.hbm_to_vmem [thread:$0]  %s16, 2048, %s18, [#allocation5], 128, 128, 8
    $region5: #{tpu_custom_call.1} parent=1 // pred_fallthru
      _
    // Predicated region
    $region6: #{tpu_custom_call.1} parent=1 // pred_check
      _
    $region7: #{tpu_custom_call.1} parent=1 // pred_check_branch
      %25 = sbr.rel (0) target = $region9
    $region8: #{tpu_custom_call.1} parent=1 // pred_region
      %27 = vsyncadd [#allocation8], 0
      %s28 = sshll.u32 %s1, 4
      %s29 = int_to_ptr.hbm [resolvable:$true] %s28
      %s30 = sshll.u32 [#allocation7], 4
      %s31 = int_to_ptr.vmem [resolvable:$true] %s30
      %36 = dma.hbm_to_vmem [thread:$0]  %s29, 2048, %s31, [#allocation8], 128, 128, 8
    $region9: #{tpu_custom_call.1} parent=1 // pred_fallthru
      _
    // Predicated region
    $region10: #{tpu_custom_call.1} parent=1 // pred_check
      _
    $region11: #{tpu_custom_call.1} parent=1 // pred_check_branch
      %38 = sbr.rel (0) target = $region13
    $region12: #{tpu_custom_call.1} parent=1 // pred_region
      %40 = vsyncadd [#allocation8], 0
      %s41 = sshll.u32 %s2, 4
      %s42 = int_to_ptr.hbm [resolvable:$true] %s41
      %s43 = sshll.u32 [#allocation9], 4
      %s44 = int_to_ptr.vmem [resolvable:$true] %s43
      %49 = dma.hbm_to_vmem [thread:$0]  %s42, 2048, %s44, [#allocation8], 128, 128, 8
    $region13: #{tpu_custom_call.1} parent=1 // pred_fallthru
      _
    // Predicated region
    $region14: #{tpu_custom_call.1} parent=1 // pred_check
      _
    $region15: #{tpu_custom_call.1} parent=1 // pred_check_branch
      %51 = sbr.rel (0) target = $region17
    $region16: #{tpu_custom_call.1} parent=1 // pred_region
      %53 = dma.done [#allocation5], 2048
    $region17: #{tpu_custom_call.1} parent=1 // pred_fallthru
      _
    // Predicated region
    $region18: #{tpu_custom_call.1} parent=1 // pred_check
      _
    $region19: #{tpu_custom_call.1} parent=1 // pred_check_branch
      %55 = sbr.rel (0) target = $region21
    $region20: #{tpu_custom_call.1} parent=1 // pred_region
      %57 = dma.done [#allocation8], 2048
    $region21: #{tpu_custom_call.1} parent=1 // pred_fallthru
      _
    // Predicated region
    $region22: #{tpu_custom_call.1} parent=1 // pred_check
      _
    $region23: #{tpu_custom_call.1} parent=1 // pred_check_branch
      %59 = sbr.rel (0) target = $region25
    $region24: #{tpu_custom_call.1} parent=1 // pred_region
      %61 = dma.done [#allocation8], 2048
    $region25: #{tpu_custom_call.1} parent=1 // pred_fallthru
      _
    %p62 = scmp.eq.s32.totalorder 0, 0
    // Predicated region
    $region26: #{tpu_custom_call.1} parent=1 // pred_check
      %p63 = pneg %p62
    $region27: #{tpu_custom_call.1} parent=1 // pred_check_branch
      %65 = sbr.rel (%p63) target = $region29
    $region28: #{tpu_custom_call.1} parent=1 // pred_region
      %66 = vst [vmem:[#allocation2] sm:$0xff] 0.0
    $region29: #{tpu_custom_call.1} parent=1 // pred_fallthru
      _
    %v67 = vld [vmem:[#allocation7] sm:$0xff]
    %v68 = vld [vmem:[#allocation7 + $0x8] sm:$0xff]
    %v69 = vld [vmem:[#allocation7 + $0x10] sm:$0xff]
    %v70 = vld [vmem:[#allocation7 + $0x18] sm:$0xff]
    %v71 = vld [vmem:[#allocation7 + $0x20] sm:$0xff]
    %v72 = vld [vmem:[#allocation7 + $0x28] sm:$0xff]
    %v73 = vld [vmem:[#allocation7 + $0x30] sm:$0xff]
    %v74 = vld [vmem:[#allocation7 + $0x38] sm:$0xff]
    %v75 = vld [vmem:[#allocation7 + $0x40] sm:$0xff]
    %v76 = vld [vmem:[#allocation7 + $0x48] sm:$0xff]
    %v77 = vld [vmem:[#allocation7 + $0x50] sm:$0xff]
    %v78 = vld [vmem:[#allocation7 + $0x58] sm:$0xff]
    %v79 = vld [vmem:[#allocation7 + $0x60] sm:$0xff]
    %v80 = vld [vmem:[#allocation7 + $0x68] sm:$0xff]
    %v81 = vld [vmem:[#allocation7 + $0x70] sm:$0xff]
    %v82 = vld [vmem:[#allocation7 + $0x78] sm:$0xff]
    %v83 = vld [vmem:[#allocation2] sm:$0xff]
    %v84 = vld [vmem:[#allocation4] sm:$0xff]
    %85 = vmatpush.msra.mxu0 %v82
    %86 = vmatpush.msra.mxu0 %v81
    %87 = vmatpush.msra.mxu0 %v80
    %88 = vmatpush.msra.mxu0 %v79
    %89 = vmatpush.msra.mxu0 %v78
    %90 = vmatpush.msra.mxu0 %v77
    %91 = vmatpush.msra.mxu0 %v76
    %92 = vmatpush.msra.mxu0 %v75
    %93 = vmatpush.msra.mxu0 %v74
    %94 = vmatpush.msra.mxu0 %v73
    %95 = vmatpush.msra.mxu0 %v72
    %96 = vmatpush.msra.mxu0 %v71
    %97 = vmatpush.msra.mxu0 %v70
    %98 = vmatpush.msra.mxu0 %v69
    %99 = vmatpush.msra.mxu0 %v68
    %100 = vmatpush.msra.mxu0 %v67
    %101 = vmatmul.f32.gmra.mxu0 %v83
    %v102 = vpop.f32.mrf.mxu0
    %v103 = vadd.f32 0.0, %v102
    %104 = vdwg.mxu0
    %v105 = vadd.f32 %v84, %v103
    %v106 = vtanh.pop %v105
    %v107 = vmul.f32 %v83, 0.2
    %v108 = vmul.f32 %v106, 0.8
    %v109 = vadd.f32 %v107, %v108
    %110 = vst [vmem:[#allocation3] sm:$0xff] %v109
    %s111 = scalar_lea.vmem [#allocation4], 8
    %v112 = vld [vmem:[%s111] sm:$0xff]
    %113 = vmatpush.msra.mxu0 %v82
    %114 = vmatpush.msra.mxu0 %v81
    %115 = vmatpush.msra.mxu0 %v80
    %116 = vmatpush.msra.mxu0 %v79
    %117 = vmatpush.msra.mxu0 %v78
    %118 = vmatpush.msra.mxu0 %v77
    %119 = vmatpush.msra.mxu0 %v76
    %120 = vmatpush.msra.mxu0 %v75
    %121 = vmatpush.msra.mxu0 %v74
    %122 = vmatpush.msra.mxu0 %v73
    %123 = vmatpush.msra.mxu0 %v72
    %124 = vmatpush.msra.mxu0 %v71
    %125 = vmatpush.msra.mxu0 %v70
    %126 = vmatpush.msra.mxu0 %v69
    %127 = vmatpush.msra.mxu0 %v68
    %128 = vmatpush.msra.mxu0 %v67
    %129 = vmatmul.f32.gmra.mxu0 %v109
    %v130 = vpop.f32.mrf.mxu0
    %v131 = vadd.f32 0.0, %v130
    %132 = vdwg.mxu0
    %v133 = vadd.f32 %v112, %v131
    %v134 = vtanh.pop %v133
    %v135 = vmul.f32 %v109, 0.2
    %v136 = vmul.f32 %v134, 0.8
    %v137 = vadd.f32 %v135, %v136
    %s138 = scalar_lea.vmem [#allocation3], 8
    %139 = vst [vmem:[%s138] sm:$0xff] %v137
    %s140 = scalar_lea.vmem [#allocation4], 16
    %v141 = vld [vmem:[%s140] sm:$0xff]
    %142 = vmatpush.msra.mxu0 %v82
    %143 = vmatpush.msra.mxu0 %v81
    %144 = vmatpush.msra.mxu0 %v80
    %145 = vmatpush.msra.mxu0 %v79
    %146 = vmatpush.msra.mxu0 %v78
    %147 = vmatpush.msra.mxu0 %v77
    %148 = vmatpush.msra.mxu0 %v76
    %149 = vmatpush.msra.mxu0 %v75
    %150 = vmatpush.msra.mxu0 %v74
    %151 = vmatpush.msra.mxu0 %v73
    %152 = vmatpush.msra.mxu0 %v72
    %153 = vmatpush.msra.mxu0 %v71
    %154 = vmatpush.msra.mxu0 %v70
    %155 = vmatpush.msra.mxu0 %v69
    %156 = vmatpush.msra.mxu0 %v68
    %157 = vmatpush.msra.mxu0 %v67
    %158 = vmatmul.f32.gmra.mxu0 %v137
    %v159 = vpop.f32.mrf.mxu0
    %v160 = vadd.f32 0.0, %v159
    %161 = vdwg.mxu0
    %v162 = vadd.f32 %v141, %v160
    %v163 = vtanh.pop %v162
    %v164 = vmul.f32 %v137, 0.2
    %v165 = vmul.f32 %v163, 0.8
    %v166 = vadd.f32 %v164, %v165
    %s167 = scalar_lea.vmem [#allocation3], 16
    %168 = vst [vmem:[%s167] sm:$0xff] %v166
    %s169 = scalar_lea.vmem [#allocation4], 24
    %v170 = vld [vmem:[%s169] sm:$0xff]
    %171 = vmatpush.msra.mxu0 %v82
    %172 = vmatpush.msra.mxu0 %v81
    %173 = vmatpush.msra.mxu0 %v80
    %174 = vmatpush.msra.mxu0 %v79
    %175 = vmatpush.msra.mxu0 %v78
    %176 = vmatpush.msra.mxu0 %v77
    %177 = vmatpush.msra.mxu0 %v76
    %178 = vmatpush.msra.mxu0 %v75
    %179 = vmatpush.msra.mxu0 %v74
    %180 = vmatpush.msra.mxu0 %v73
    %181 = vmatpush.msra.mxu0 %v72
    %182 = vmatpush.msra.mxu0 %v71
    %183 = vmatpush.msra.mxu0 %v70
    %184 = vmatpush.msra.mxu0 %v69
    %185 = vmatpush.msra.mxu0 %v68
    %186 = vmatpush.msra.mxu0 %v67
    %187 = vmatmul.f32.gmra.mxu0 %v166
    %v188 = vpop.f32.mrf.mxu0
    %v189 = vadd.f32 0.0, %v188
    %190 = vdwg.mxu0
    %v191 = vadd.f32 %v170, %v189
    %v192 = vtanh.pop %v191
    %v193 = vmul.f32 %v166, 0.2
    %v194 = vmul.f32 %v192, 0.8
    %v195 = vadd.f32 %v193, %v194
    %s196 = scalar_lea.vmem [#allocation3], 24
    %197 = vst [vmem:[%s196] sm:$0xff] %v195
    %s198 = scalar_lea.vmem [#allocation4], 32
    %v199 = vld [vmem:[%s198] sm:$0xff]
    %200 = vmatpush.msra.mxu0 %v82
    %201 = vmatpush.msra.mxu0 %v81
    %202 = vmatpush.msra.mxu0 %v80
    %203 = vmatpush.msra.mxu0 %v79
    %204 = vmatpush.msra.mxu0 %v78
    %205 = vmatpush.msra.mxu0 %v77
    %206 = vmatpush.msra.mxu0 %v76
    %207 = vmatpush.msra.mxu0 %v75
    %208 = vmatpush.msra.mxu0 %v74
    %209 = vmatpush.msra.mxu0 %v73
    %210 = vmatpush.msra.mxu0 %v72
    %211 = vmatpush.msra.mxu0 %v71
    %212 = vmatpush.msra.mxu0 %v70
    %213 = vmatpush.msra.mxu0 %v69
    %214 = vmatpush.msra.mxu0 %v68
    %215 = vmatpush.msra.mxu0 %v67
    %216 = vmatmul.f32.gmra.mxu0 %v195
    %v217 = vpop.f32.mrf.mxu0
    %v218 = vadd.f32 0.0, %v217
    %219 = vdwg.mxu0
    %v220 = vadd.f32 %v199, %v218
    %v221 = vtanh.pop %v220
    %v222 = vmul.f32 %v195, 0.2
    %v223 = vmul.f32 %v221, 0.8
    %v224 = vadd.f32 %v222, %v223
    %s225 = scalar_lea.vmem [#allocation3], 32
    %226 = vst [vmem:[%s225] sm:$0xff] %v224
    %s227 = scalar_lea.vmem [#allocation4], 40
    %v228 = vld [vmem:[%s227] sm:$0xff]
    %229 = vmatpush.msra.mxu0 %v82
    %230 = vmatpush.msra.mxu0 %v81
    %231 = vmatpush.msra.mxu0 %v80
    %232 = vmatpush.msra.mxu0 %v79
    %233 = vmatpush.msra.mxu0 %v78
    %234 = vmatpush.msra.mxu0 %v77
    %235 = vmatpush.msra.mxu0 %v76
    %236 = vmatpush.msra.mxu0 %v75
    %237 = vmatpush.msra.mxu0 %v74
    %238 = vmatpush.msra.mxu0 %v73
    %239 = vmatpush.msra.mxu0 %v72
    %240 = vmatpush.msra.mxu0 %v71
    %241 = vmatpush.msra.mxu0 %v70
    %242 = vmatpush.msra.mxu0 %v69
    %243 = vmatpush.msra.mxu0 %v68
    %244 = vmatpush.msra.mxu0 %v67
    %245 = vmatmul.f32.gmra.mxu0 %v224
    %v246 = vpop.f32.mrf.mxu0
    %v247 = vadd.f32 0.0, %v246
    %248 = vdwg.mxu0
    %v249 = vadd.f32 %v228, %v247
    %v250 = vtanh.pop %v249
    %v251 = vmul.f32 %v224, 0.2
    %v252 = vmul.f32 %v250, 0.8
    %v253 = vadd.f32 %v251, %v252
    %s254 = scalar_lea.vmem [#allocation3], 40
    %255 = vst [vmem:[%s254] sm:$0xff] %v253
    %s256 = scalar_lea.vmem [#allocation4], 48
    %v257 = vld [vmem:[%s256] sm:$0xff]
    %258 = vmatpush.msra.mxu0 %v82
    %259 = vmatpush.msra.mxu0 %v81
    %260 = vmatpush.msra.mxu0 %v80
    %261 = vmatpush.msra.mxu0 %v79
    %262 = vmatpush.msra.mxu0 %v78
    %263 = vmatpush.msra.mxu0 %v77
    %264 = vmatpush.msra.mxu0 %v76
    %265 = vmatpush.msra.mxu0 %v75
    %266 = vmatpush.msra.mxu0 %v74
    %267 = vmatpush.msra.mxu0 %v73
    %268 = vmatpush.msra.mxu0 %v72
    %269 = vmatpush.msra.mxu0 %v71
    %270 = vmatpush.msra.mxu0 %v70
    %271 = vmatpush.msra.mxu0 %v69
    %272 = vmatpush.msra.mxu0 %v68
    %273 = vmatpush.msra.mxu0 %v67
    %274 = vmatmul.f32.gmra.mxu0 %v253
    %v275 = vpop.f32.mrf.mxu0
    %v276 = vadd.f32 0.0, %v275
    %277 = vdwg.mxu0
    %v278 = vadd.f32 %v257, %v276
    %v279 = vtanh.pop %v278
    %v280 = vmul.f32 %v253, 0.2
    %v281 = vmul.f32 %v279, 0.8
    %v282 = vadd.f32 %v280, %v281
    %s283 = scalar_lea.vmem [#allocation3], 48
    %284 = vst [vmem:[%s283] sm:$0xff] %v282
    %s285 = scalar_lea.vmem [#allocation4], 56
    %v286 = vld [vmem:[%s285] sm:$0xff]
    %287 = vmatpush.msra.mxu0 %v82
    %288 = vmatpush.msra.mxu0 %v81
    %289 = vmatpush.msra.mxu0 %v80
    %290 = vmatpush.msra.mxu0 %v79
    %291 = vmatpush.msra.mxu0 %v78
    %292 = vmatpush.msra.mxu0 %v77
    %293 = vmatpush.msra.mxu0 %v76
    %294 = vmatpush.msra.mxu0 %v75
    %295 = vmatpush.msra.mxu0 %v74
    %296 = vmatpush.msra.mxu0 %v73
    %297 = vmatpush.msra.mxu0 %v72
    %298 = vmatpush.msra.mxu0 %v71
    %299 = vmatpush.msra.mxu0 %v70
    %300 = vmatpush.msra.mxu0 %v69
    %301 = vmatpush.msra.mxu0 %v68
    %302 = vmatpush.msra.mxu0 %v67
    %303 = vmatmul.f32.gmra.mxu0 %v282
    %v304 = vpop.f32.mrf.mxu0
    %v305 = vadd.f32 0.0, %v304
    %306 = vdwg.mxu0
    %v307 = vadd.f32 %v286, %v305
    %v308 = vtanh.pop %v307
    %v309 = vmul.f32 %v282, 0.2
    %v310 = vmul.f32 %v308, 0.8
    %v311 = vadd.f32 %v309, %v310
    %s312 = scalar_lea.vmem [#allocation3], 56
    %313 = vst [vmem:[%s312] sm:$0xff] %v311
    %s314 = scalar_lea.vmem [#allocation4], 64
    %v315 = vld [vmem:[%s314] sm:$0xff]
    %316 = vmatpush.msra.mxu0 %v82
    %317 = vmatpush.msra.mxu0 %v81
    %318 = vmatpush.msra.mxu0 %v80
    %319 = vmatpush.msra.mxu0 %v79
    %320 = vmatpush.msra.mxu0 %v78
    %321 = vmatpush.msra.mxu0 %v77
    %322 = vmatpush.msra.mxu0 %v76
    %323 = vmatpush.msra.mxu0 %v75
    %324 = vmatpush.msra.mxu0 %v74
    %325 = vmatpush.msra.mxu0 %v73
    %326 = vmatpush.msra.mxu0 %v72
    %327 = vmatpush.msra.mxu0 %v71
    %328 = vmatpush.msra.mxu0 %v70
    %329 = vmatpush.msra.mxu0 %v69
    %330 = vmatpush.msra.mxu0 %v68
    %331 = vmatpush.msra.mxu0 %v67
    %332 = vmatmul.f32.gmra.mxu0 %v311
    %v333 = vpop.f32.mrf.mxu0
    %v334 = vadd.f32 0.0, %v333
    %335 = vdwg.mxu0
    %v336 = vadd.f32 %v315, %v334
    %v337 = vtanh.pop %v336
    %v338 = vmul.f32 %v311, 0.2
    %v339 = vmul.f32 %v337, 0.8
    %v340 = vadd.f32 %v338, %v339
    %s341 = scalar_lea.vmem [#allocation3], 64
    %342 = vst [vmem:[%s341] sm:$0xff] %v340
    %s343 = scalar_lea.vmem [#allocation4], 72
    %v344 = vld [vmem:[%s343] sm:$0xff]
    %345 = vmatpush.msra.mxu0 %v82
    %346 = vmatpush.msra.mxu0 %v81
    %347 = vmatpush.msra.mxu0 %v80
    %348 = vmatpush.msra.mxu0 %v79
    %349 = vmatpush.msra.mxu0 %v78
    %350 = vmatpush.msra.mxu0 %v77
    %351 = vmatpush.msra.mxu0 %v76
    %352 = vmatpush.msra.mxu0 %v75
    %353 = vmatpush.msra.mxu0 %v74
    %354 = vmatpush.msra.mxu0 %v73
    %355 = vmatpush.msra.mxu0 %v72
    %356 = vmatpush.msra.mxu0 %v71
    %357 = vmatpush.msra.mxu0 %v70
    %358 = vmatpush.msra.mxu0 %v69
    %359 = vmatpush.msra.mxu0 %v68
    %360 = vmatpush.msra.mxu0 %v67
    %361 = vmatmul.f32.gmra.mxu0 %v340
    %v362 = vpop.f32.mrf.mxu0
    %v363 = vadd.f32 0.0, %v362
    %364 = vdwg.mxu0
    %v365 = vadd.f32 %v344, %v363
    %v366 = vtanh.pop %v365
    %v367 = vmul.f32 %v340, 0.2
    %v368 = vmul.f32 %v366, 0.8
    %v369 = vadd.f32 %v367, %v368
    %s370 = scalar_lea.vmem [#allocation3], 72
    %371 = vst [vmem:[%s370] sm:$0xff] %v369
    %s372 = scalar_lea.vmem [#allocation4], 80
    %v373 = vld [vmem:[%s372] sm:$0xff]
    %374 = vmatpush.msra.mxu0 %v82
    %375 = vmatpush.msra.mxu0 %v81
    %376 = vmatpush.msra.mxu0 %v80
    %377 = vmatpush.msra.mxu0 %v79
    %378 = vmatpush.msra.mxu0 %v78
    %379 = vmatpush.msra.mxu0 %v77
    %380 = vmatpush.msra.mxu0 %v76
    %381 = vmatpush.msra.mxu0 %v75
    %382 = vmatpush.msra.mxu0 %v74
    %383 = vmatpush.msra.mxu0 %v73
    %384 = vmatpush.msra.mxu0 %v72
    %385 = vmatpush.msra.mxu0 %v71
    %386 = vmatpush.msra.mxu0 %v70
    %387 = vmatpush.msra.mxu0 %v69
    %388 = vmatpush.msra.mxu0 %v68
    %389 = vmatpush.msra.mxu0 %v67
    %390 = vmatmul.f32.gmra.mxu0 %v369
    %v391 = vpop.f32.mrf.mxu0
    %v392 = vadd.f32 0.0, %v391
    %393 = vdwg.mxu0
    %v394 = vadd.f32 %v373, %v392
    %v395 = vtanh.pop %v394
    %v396 = vmul.f32 %v369, 0.2
    %v397 = vmul.f32 %v395, 0.8
    %v398 = vadd.f32 %v396, %v397
    %s399 = scalar_lea.vmem [#allocation3], 80
    %400 = vst [vmem:[%s399] sm:$0xff] %v398
    %s401 = scalar_lea.vmem [#allocation4], 88
    %v402 = vld [vmem:[%s401] sm:$0xff]
    %403 = vmatpush.msra.mxu0 %v82
    %404 = vmatpush.msra.mxu0 %v81
    %405 = vmatpush.msra.mxu0 %v80
    %406 = vmatpush.msra.mxu0 %v79
    %407 = vmatpush.msra.mxu0 %v78
    %408 = vmatpush.msra.mxu0 %v77
    %409 = vmatpush.msra.mxu0 %v76
    %410 = vmatpush.msra.mxu0 %v75
    %411 = vmatpush.msra.mxu0 %v74
    %412 = vmatpush.msra.mxu0 %v73
    %413 = vmatpush.msra.mxu0 %v72
    %414 = vmatpush.msra.mxu0 %v71
    %415 = vmatpush.msra.mxu0 %v70
    %416 = vmatpush.msra.mxu0 %v69
    %417 = vmatpush.msra.mxu0 %v68
    %418 = vmatpush.msra.mxu0 %v67
    %419 = vmatmul.f32.gmra.mxu0 %v398
    %v420 = vpop.f32.mrf.mxu0
    %v421 = vadd.f32 0.0, %v420
    %422 = vdwg.mxu0
    %v423 = vadd.f32 %v402, %v421
    %v424 = vtanh.pop %v423
    %v425 = vmul.f32 %v398, 0.2
    %v426 = vmul.f32 %v424, 0.8
    %v427 = vadd.f32 %v425, %v426
    %s428 = scalar_lea.vmem [#allocation3], 88
    %429 = vst [vmem:[%s428] sm:$0xff] %v427
    %s430 = scalar_lea.vmem [#allocation4], 96
    %v431 = vld [vmem:[%s430] sm:$0xff]
    %432 = vmatpush.msra.mxu0 %v82
    %433 = vmatpush.msra.mxu0 %v81
    %434 = vmatpush.msra.mxu0 %v80
    %435 = vmatpush.msra.mxu0 %v79
    %436 = vmatpush.msra.mxu0 %v78
    %437 = vmatpush.msra.mxu0 %v77
    %438 = vmatpush.msra.mxu0 %v76
    %439 = vmatpush.msra.mxu0 %v75
    %440 = vmatpush.msra.mxu0 %v74
    %441 = vmatpush.msra.mxu0 %v73
    %442 = vmatpush.msra.mxu0 %v72
    %443 = vmatpush.msra.mxu0 %v71
    %444 = vmatpush.msra.mxu0 %v70
    %445 = vmatpush.msra.mxu0 %v69
    %446 = vmatpush.msra.mxu0 %v68
    %447 = vmatpush.msra.mxu0 %v67
    %448 = vmatmul.f32.gmra.mxu0 %v427
    %v449 = vpop.f32.mrf.mxu0
    %v450 = vadd.f32 0.0, %v449
    %451 = vdwg.mxu0
    %v452 = vadd.f32 %v431, %v450
    %v453 = vtanh.pop %v452
    %v454 = vmul.f32 %v427, 0.2
    %v455 = vmul.f32 %v453, 0.8
    %v456 = vadd.f32 %v454, %v455
    %s457 = scalar_lea.vmem [#allocation3], 96
    %458 = vst [vmem:[%s457] sm:$0xff] %v456
    %s459 = scalar_lea.vmem [#allocation4], 104
    %v460 = vld [vmem:[%s459] sm:$0xff]
    %461 = vmatpush.msra.mxu0 %v82
    %462 = vmatpush.msra.mxu0 %v81
    %463 = vmatpush.msra.mxu0 %v80
    %464 = vmatpush.msra.mxu0 %v79
    %465 = vmatpush.msra.mxu0 %v78
    %466 = vmatpush.msra.mxu0 %v77
    %467 = vmatpush.msra.mxu0 %v76
    %468 = vmatpush.msra.mxu0 %v75
    %469 = vmatpush.msra.mxu0 %v74
    %470 = vmatpush.msra.mxu0 %v73
    %471 = vmatpush.msra.mxu0 %v72
    %472 = vmatpush.msra.mxu0 %v71
    %473 = vmatpush.msra.mxu0 %v70
    %474 = vmatpush.msra.mxu0 %v69
    %475 = vmatpush.msra.mxu0 %v68
    %476 = vmatpush.msra.mxu0 %v67
    %477 = vmatmul.f32.gmra.mxu0 %v456
    %v478 = vpop.f32.mrf.mxu0
    %v479 = vadd.f32 0.0, %v478
    %480 = vdwg.mxu0
    %v481 = vadd.f32 %v460, %v479
    %v482 = vtanh.pop %v481
    %v483 = vmul.f32 %v456, 0.2
    %v484 = vmul.f32 %v482, 0.8
    %v485 = vadd.f32 %v483, %v484
    %s486 = scalar_lea.vmem [#allocation3], 104
    %487 = vst [vmem:[%s486] sm:$0xff] %v485
    %s488 = scalar_lea.vmem [#allocation4], 112
    %v489 = vld [vmem:[%s488] sm:$0xff]
    %490 = vmatpush.msra.mxu0 %v82
    %491 = vmatpush.msra.mxu0 %v81
    %492 = vmatpush.msra.mxu0 %v80
    %493 = vmatpush.msra.mxu0 %v79
    %494 = vmatpush.msra.mxu0 %v78
    %495 = vmatpush.msra.mxu0 %v77
    %496 = vmatpush.msra.mxu0 %v76
    %497 = vmatpush.msra.mxu0 %v75
    %498 = vmatpush.msra.mxu0 %v74
    %499 = vmatpush.msra.mxu0 %v73
    %500 = vmatpush.msra.mxu0 %v72
    %501 = vmatpush.msra.mxu0 %v71
    %502 = vmatpush.msra.mxu0 %v70
    %503 = vmatpush.msra.mxu0 %v69
    %504 = vmatpush.msra.mxu0 %v68
    %505 = vmatpush.msra.mxu0 %v67
    %506 = vmatmul.f32.gmra.mxu0 %v485
    %v507 = vpop.f32.mrf.mxu0
    %v508 = vadd.f32 0.0, %v507
    %509 = vdwg.mxu0
    %v510 = vadd.f32 %v489, %v508
    %v511 = vtanh.pop %v510
    %v512 = vmul.f32 %v485, 0.2
    %v513 = vmul.f32 %v511, 0.8
    %v514 = vadd.f32 %v512, %v513
    %s515 = scalar_lea.vmem [#allocation3], 112
    %516 = vst [vmem:[%s515] sm:$0xff] %v514
    %s517 = scalar_lea.vmem [#allocation4], 120
    %v518 = vld [vmem:[%s517] sm:$0xff]
    %519 = vmatpush.msra.mxu0 %v82
    %520 = vmatpush.msra.mxu0 %v81
    %521 = vmatpush.msra.mxu0 %v80
    %522 = vmatpush.msra.mxu0 %v79
    %523 = vmatpush.msra.mxu0 %v78
    %524 = vmatpush.msra.mxu0 %v77
    %525 = vmatpush.msra.mxu0 %v76
    %526 = vmatpush.msra.mxu0 %v75
    %527 = vmatpush.msra.mxu0 %v74
    %528 = vmatpush.msra.mxu0 %v73
    %529 = vmatpush.msra.mxu0 %v72
    %530 = vmatpush.msra.mxu0 %v71
    %531 = vmatpush.msra.mxu0 %v70
    %532 = vmatpush.msra.mxu0 %v69
    %533 = vmatpush.msra.mxu0 %v68
    %534 = vmatpush.msra.mxu0 %v67
    %535 = vmatmul.f32.gmra.mxu0 %v514
    %v536 = vpop.f32.mrf.mxu0
    %v537 = vadd.f32 0.0, %v536
    %538 = vdwg.mxu0
    %v539 = vadd.f32 %v518, %v537
    %v540 = vtanh.pop %v539
    %v541 = vmul.f32 %v514, 0.2
    %v542 = vmul.f32 %v540, 0.8
    %v543 = vadd.f32 %v541, %v542
    %s544 = scalar_lea.vmem [#allocation3], 120
    %545 = vst [vmem:[%s544] sm:$0xff] %v543
    %546 = vst [vmem:[#allocation2] sm:$0xff] %v543
    %v547 = vld [vmem:[#allocation3] sm:$0xff]
    %v548 = vld [vmem:[#allocation3 + $0x8] sm:$0xff]
    %v549 = vld [vmem:[#allocation3 + $0x10] sm:$0xff]
    %v550 = vld [vmem:[#allocation3 + $0x18] sm:$0xff]
    %v551 = vld [vmem:[#allocation3 + $0x20] sm:$0xff]
    %v552 = vld [vmem:[#allocation3 + $0x28] sm:$0xff]
    %v553 = vld [vmem:[#allocation3 + $0x30] sm:$0xff]
    %v554 = vld [vmem:[#allocation3 + $0x38] sm:$0xff]
    %v555 = vld [vmem:[#allocation3 + $0x40] sm:$0xff]
    %v556 = vld [vmem:[#allocation3 + $0x48] sm:$0xff]
    %v557 = vld [vmem:[#allocation3 + $0x50] sm:$0xff]
    %v558 = vld [vmem:[#allocation3 + $0x58] sm:$0xff]
    %v559 = vld [vmem:[#allocation3 + $0x60] sm:$0xff]
    %v560 = vld [vmem:[#allocation3 + $0x68] sm:$0xff]
    %v561 = vld [vmem:[#allocation3 + $0x70] sm:$0xff]
    %v562 = vld [vmem:[#allocation3 + $0x78] sm:$0xff]
    %v563 = vld [vmem:[#allocation9] sm:$0xff]
    %v564 = vld [vmem:[#allocation9 + $0x8] sm:$0xff]
    %v565 = vld [vmem:[#allocation9 + $0x10] sm:$0xff]
    %v566 = vld [vmem:[#allocation9 + $0x18] sm:$0xff]
    %v567 = vld [vmem:[#allocation9 + $0x20] sm:$0xff]
    %v568 = vld [vmem:[#allocation9 + $0x28] sm:$0xff]
    %v569 = vld [vmem:[#allocation9 + $0x30] sm:$0xff]
    %v570 = vld [vmem:[#allocation9 + $0x38] sm:$0xff]
    %v571 = vld [vmem:[#allocation9 + $0x40] sm:$0xff]
    %v572 = vld [vmem:[#allocation9 + $0x48] sm:$0xff]
    %v573 = vld [vmem:[#allocation9 + $0x50] sm:$0xff]
    %v574 = vld [vmem:[#allocation9 + $0x58] sm:$0xff]
    %v575 = vld [vmem:[#allocation9 + $0x60] sm:$0xff]
    %v576 = vld [vmem:[#allocation9 + $0x68] sm:$0xff]
    %v577 = vld [vmem:[#allocation9 + $0x70] sm:$0xff]
    %v578 = vld [vmem:[#allocation9 + $0x78] sm:$0xff]
    %579 = vmatpush.msra.mxu0 %v578
    %580 = vmatpush.msra.mxu0 %v577
    %581 = vmatpush.msra.mxu0 %v576
    %582 = vmatpush.msra.mxu0 %v575
    %583 = vmatpush.msra.mxu0 %v574
    %584 = vmatpush.msra.mxu0 %v573
    %585 = vmatpush.msra.mxu0 %v572
    %586 = vmatpush.msra.mxu0 %v571
    %587 = vmatpush.msra.mxu0 %v570
    %588 = vmatpush.msra.mxu0 %v569
    %589 = vmatpush.msra.mxu0 %v568
    %590 = vmatpush.msra.mxu0 %v567
    %591 = vmatpush.msra.mxu0 %v566
    %592 = vmatpush.msra.mxu0 %v565
    %593 = vmatpush.msra.mxu0 %v564
    %594 = vmatpush.msra.mxu0 %v563
    %595 = vmatmul.f32.gmra.mxu0 %v547
    %v596 = vpop.f32.mrf.mxu0
    %v597 = vadd.f32 0.0, %v596
    %598 = vmatmul.f32.gmra.mxu0 %v548
    %v599 = vpop.f32.mrf.mxu0
    %v600 = vadd.f32 0.0, %v599
    %601 = vmatmul.f32.gmra.mxu0 %v549
    %v602 = vpop.f32.mrf.mxu0
    %v603 = vadd.f32 0.0, %v602
    %604 = vmatmul.f32.gmra.mxu0 %v550
    %v605 = vpop.f32.mrf.mxu0
    %v606 = vadd.f32 0.0, %v605
    %607 = vmatmul.f32.gmra.mxu0 %v551
    %v608 = vpop.f32.mrf.mxu0
    %v609 = vadd.f32 0.0, %v608
    %610 = vmatmul.f32.gmra.mxu0 %v552
    %v611 = vpop.f32.mrf.mxu0
    %v612 = vadd.f32 0.0, %v611
    %613 = vmatmul.f32.gmra.mxu0 %v553
    %v614 = vpop.f32.mrf.mxu0
    %v615 = vadd.f32 0.0, %v614
    %616 = vmatmul.f32.gmra.mxu0 %v554
    %v617 = vpop.f32.mrf.mxu0
    %v618 = vadd.f32 0.0, %v617
    %619 = vmatmul.f32.gmra.mxu0 %v555
    %v620 = vpop.f32.mrf.mxu0
    %v621 = vadd.f32 0.0, %v620
    %622 = vmatmul.f32.gmra.mxu0 %v556
    %v623 = vpop.f32.mrf.mxu0
    %v624 = vadd.f32 0.0, %v623
    %625 = vmatmul.f32.gmra.mxu0 %v557
    %v626 = vpop.f32.mrf.mxu0
    %v627 = vadd.f32 0.0, %v626
    %628 = vmatmul.f32.gmra.mxu0 %v558
    %v629 = vpop.f32.mrf.mxu0
    %v630 = vadd.f32 0.0, %v629
    %631 = vmatmul.f32.gmra.mxu0 %v559
    %v632 = vpop.f32.mrf.mxu0
    %v633 = vadd.f32 0.0, %v632
    %634 = vmatmul.f32.gmra.mxu0 %v560
    %v635 = vpop.f32.mrf.mxu0
    %v636 = vadd.f32 0.0, %v635
    %637 = vmatmul.f32.gmra.mxu0 %v561
    %v638 = vpop.f32.mrf.mxu0
    %v639 = vadd.f32 0.0, %v638
    %640 = vmatmul.f32.gmra.mxu0 %v562
    %v641 = vpop.f32.mrf.mxu0
    %v642 = vadd.f32 0.0, %v641
    %643 = vdwg.mxu0
    %644 = vst [vmem:[#allocation10] sm:$0xff] %v597
    %645 = vst [vmem:[#allocation10 + $0x8] sm:$0xff] %v600
    %646 = vst [vmem:[#allocation10 + $0x10] sm:$0xff] %v603
    %647 = vst [vmem:[#allocation10 + $0x18] sm:$0xff] %v606
    %648 = vst [vmem:[#allocation10 + $0x20] sm:$0xff] %v609
    %649 = vst [vmem:[#allocation10 + $0x28] sm:$0xff] %v612
    %650 = vst [vmem:[#allocation10 + $0x30] sm:$0xff] %v615
    %651 = vst [vmem:[#allocation10 + $0x38] sm:$0xff] %v618
    %652 = vst [vmem:[#allocation10 + $0x40] sm:$0xff] %v621
    %653 = vst [vmem:[#allocation10 + $0x48] sm:$0xff] %v624
    %654 = vst [vmem:[#allocation10 + $0x50] sm:$0xff] %v627
    %655 = vst [vmem:[#allocation10 + $0x58] sm:$0xff] %v630
    %656 = vst [vmem:[#allocation10 + $0x60] sm:$0xff] %v633
    %657 = vst [vmem:[#allocation10 + $0x68] sm:$0xff] %v636
    %658 = vst [vmem:[#allocation10 + $0x70] sm:$0xff] %v639
    %659 = vst [vmem:[#allocation10 + $0x78] sm:$0xff] %v642
    // Predicated region
    $region30: #{tpu_custom_call.1} parent=1 // pred_check
      _
    $region31: #{tpu_custom_call.1} parent=1 // pred_check_branch
      %661 = sbr.rel (0) target = $region33
    $region32: #{tpu_custom_call.1} parent=1 // pred_region
      %663 = vsyncadd [#allocation6], 0
      %s664 = sshll.u32 [#allocation10], 4
      %s665 = int_to_ptr.vmem [resolvable:$true] %s664
      %s666 = sshll.u32 %s3, 4
      %s667 = int_to_ptr.hbm [resolvable:$true] %s666
      %672 = dma.vmem_to_hbm [thread:$0]  %s665, 2048, %s667, [#allocation6], 128, 128, 8
    $region33: #{tpu_custom_call.1} parent=1 // pred_fallthru
      _
    // Predicated region
    $region34: #{tpu_custom_call.1} parent=1 // pred_check
      _
    $region35: #{tpu_custom_call.1} parent=1 // pred_check_branch
      %674 = sbr.rel (0) target = $region37
    $region36: #{tpu_custom_call.1} parent=1 // pred_region
      %676 = dma.done [#allocation6], 2048
    $region37: #{tpu_custom_call.1} parent=1 // pred_fallthru
      _
    %677 = vsyncpa [#allocation5], 1
    %678 = vsyncpa [#allocation8], 1
    %679 = vsyncpa [#allocation6], 1

</llo_original>
